<compile_context>
chip_gen: v7x
topology: tpu7x:2x2x1
jax: 0.10.0
libtpu: 0.0.40
codegen_flags: <defaults>
</compile_context>

<pallas_src>
import functools

import jax
import jax.numpy as jnp
from jax.experimental import pallas as pl
from jax.experimental.pallas import tpu as pltpu


def _round_up(v, m):
    return ((v + m - 1) // m) * m


def _linear_clamp_kernel(x_ref, w_ref, o_ref, *, k_dim, min_value, max_value,
                         use_mxu):
    x = x_ref[...]          # (TILE_M, K)  f32
    w = w_ref[...]          # (K, N)       f32  (pre-transposed)
    if use_mxu:
        y = jnp.dot(x, w, preferred_element_type=jnp.float32)
    else:
        # Tiny contraction / narrow output: unrolled VPU multiply-adds, no MXU.
        y = x[:, 0:1] * w[0:1, :]
        for k in range(1, k_dim):
            y = y + x[:, k:k + 1] * w[k:k + 1, :]
    # torch order: clamp_min first, then clamp_max (NaN propagates naturally).
    y = jnp.maximum(y, jnp.float32(min_value))
    y = jnp.minimum(y, jnp.float32(max_value))
    o_ref[...] = y.astype(o_ref.dtype)


def _choose_tile_m(m):
    # Multiple of 8 (f32 sublane), capped at 2048; prefer >= 2 grid steps so
    # the ("parallel",) axis can shard across v7x's two TensorCores.
    if m <= 8:
        return 8
    return min(2048, _round_up(pl.cdiv(m, 2), 8))


@functools.partial(jax.jit,
                   static_argnames=("min_value", "max_value",
                                    "small_m_fallback"))
def _linear_clamp_impl(x, w, *, min_value, max_value, small_m_fallback):
    """x: (M, K) f32, w: (N, K) f32 (torch Linear layout).

    Returns clamp_max(clamp_min(x @ w.T, min_value), max_value), shape (M, N).
    """
    M, K = x.shape
    N, K2 = w.shape
    assert K == K2, (x.shape, w.shape)

    x = x.astype(jnp.float32)
    w_t = w.T.astype(jnp.float32)      # (K, N); constant-folds under jit.

    if small_m_fallback and M < 1024:
        # Tiny problem: XLA fuses matmul+clamp into one kernel; pallas_call
        # dispatch overhead would dominate here.
        y = x @ w_t
        return jnp.minimum(jnp.maximum(y, jnp.float32(min_value)),
                           jnp.float32(max_value))

    tile_m = _choose_tile_m(M)
    grid = (pl.cdiv(M, tile_m),)

    kernel = functools.partial(
        _linear_clamp_kernel,
        k_dim=K, min_value=float(min_value), max_value=float(max_value),
        use_mxu=(K >= 128 and N >= 128),
    )
    return pl.pallas_call(
        kernel,
        out_shape=jax.ShapeDtypeStruct((M, N), jnp.float32),
        grid=grid,
        in_specs=[
            pl.BlockSpec((tile_m, K), lambda i: (i, 0)),   # x tile per step
            pl.BlockSpec((K, N), lambda i: (0, 0)),        # weight resident
        ],
        out_specs=pl.BlockSpec((tile_m, N), lambda i: (i, 0)),
        compiler_params=pltpu.CompilerParams(
            dimension_semantics=("parallel",)),
    )(x, w_t)


def linear_clamp(x, w, *, min_value, max_value, small_m_fallback=True):
    return _linear_clamp_impl(
        x, w,
        min_value=float(min_value), max_value=float(max_value),
        small_m_fallback=bool(small_m_fallback),
    )


class Model:
    """JAX/Pallas counterpart of the PyTorch Model."""

    def __init__(self, min_value, max_value):
        self.min_value = min_value
        self.max_value = max_value
        # weight = ones([out_features=2, in_features=3]); zero bias dropped.
        self.weight = jnp.ones((2, 3), dtype=jnp.float32)

    def __call__(self, x1, *, small_m_fallback=True):
        return linear_clamp(
            x1, self.weight,
            min_value=self.min_value, max_value=self.max_value,
            small_m_fallback=small_m_fallback,
        )


if __name__ == "__main__":
    key = jax.random.PRNGKey(0)
    k1, k2 = jax.random.split(key)

    def ref_fn(x, w, lo, hi):
        return jnp.minimum(jnp.maximum(x @ w.T, jnp.float32(lo)),
                           jnp.float32(hi))

    # Small input consistent with in_features=3 of the linear layer.
    x1 = jax.random.normal(k1, (4, 3), dtype=jnp.float32)

    # (1) Exact Model instance from the spec (min == max == 1); force the
    #     Pallas path so the kernel is actually exercised at small M.
    model = Model(min_value=1, max_value=1)
    out = jax.block_until_ready(model(x1, small_m_fallback=False))
    assert out.shape == (4, 2), out.shape
    assert jnp.allclose(out, ref_fn(x1, model.weight, 1.0, 1.0), atol=1e-6)

    # (2) Same instance via the small-M XLA fallback path.
    out_fb = jax.block_until_ready(model(x1))
    assert jnp.allclose(out_fb, ref_fn(x1, model.weight, 1.0, 1.0), atol=1e-6)

    # (3) Non-degenerate bounds + larger (ragged) batch: exercises the
    #     multi-step "parallel" grid and masked last block.
    model2 = Model(min_value=-0.5, max_value=2.0)
    x3 = jax.random.normal(k2, (2000, 3), dtype=jnp.float32)
    out3 = jax.block_until_ready(model2(x3, small_m_fallback=False))
    assert out3.shape == (2000, 2), out3.shape
    assert jnp.allclose(out3, ref_fn(x3, model2.weight, -0.5, 2.0), atol=1e-5)

    print("KERNEL_OK")
</pallas_src>

<mosaic_0001>
module attributes {stable_mosaic.version = 11 : i64} {
  func.func @_linear_clamp_kernel(%arg0: i32, %arg1: memref<8x3xf32, #tpu.memory_space<vmem>>, %arg2: memref<3x2xf32, #tpu.memory_space<vmem>>, %arg3: memref<8x2xf32, #tpu.memory_space<vmem>>) attributes {dimension_semantics = [#tpu.dimension_semantics<parallel>], iteration_bounds = array<i64: 1>, scalar_prefetch = 0 : i64, scratch_operands = 0 : i64, tpu.core_type = #tpu.core_type<tc>, window_params = [{transform_indices = @transform_0, window_bounds = array<i64: 8, 3>}, {pipeline_mode = #tpu.pipeline_mode<synchronous>, transform_indices = @transform_1, window_bounds = array<i64: 3, 2>}, {transform_indices = @transform_2, window_bounds = array<i64: 8, 2>}]} {
    %c0 = arith.constant 0 : index
    %c0_0 = arith.constant 0 : index
    %0 = vector.load %arg1[%c0, %c0_0] : memref<8x3xf32, #tpu.memory_space<vmem>>, vector<8x3xf32>
    %c0_1 = arith.constant 0 : index
    %c0_2 = arith.constant 0 : index
    %1 = vector.load %arg2[%c0_1, %c0_2] : memref<3x2xf32, #tpu.memory_space<vmem>>, vector<3x2xf32>
    %2 = vector.extract_strided_slice %0 {offsets = [0, 0], sizes = [8, 1], strides = [1, 1]} : vector<8x3xf32> to vector<8x1xf32>
    %3 = vector.extract_strided_slice %1 {offsets = [0, 0], sizes = [1, 2], strides = [1, 1]} : vector<3x2xf32> to vector<1x2xf32>
    %4 = vector.broadcast %2 : vector<8x1xf32> to vector<8x2xf32>
    %5 = vector.broadcast %3 : vector<1x2xf32> to vector<8x2xf32>
    %6 = arith.mulf %4, %5 : vector<8x2xf32>
    %7 = vector.extract_strided_slice %0 {offsets = [0, 1], sizes = [8, 1], strides = [1, 1]} : vector<8x3xf32> to vector<8x1xf32>
    %8 = vector.extract_strided_slice %1 {offsets = [1, 0], sizes = [1, 2], strides = [1, 1]} : vector<3x2xf32> to vector<1x2xf32>
    %9 = vector.broadcast %7 : vector<8x1xf32> to vector<8x2xf32>
    %10 = vector.broadcast %8 : vector<1x2xf32> to vector<8x2xf32>
    %11 = arith.mulf %9, %10 : vector<8x2xf32>
    %12 = arith.addf %6, %11 : vector<8x2xf32>
    %13 = vector.extract_strided_slice %0 {offsets = [0, 2], sizes = [8, 1], strides = [1, 1]} : vector<8x3xf32> to vector<8x1xf32>
    %14 = vector.extract_strided_slice %1 {offsets = [2, 0], sizes = [1, 2], strides = [1, 1]} : vector<3x2xf32> to vector<1x2xf32>
    %15 = vector.broadcast %13 : vector<8x1xf32> to vector<8x2xf32>
    %16 = vector.broadcast %14 : vector<1x2xf32> to vector<8x2xf32>
    %17 = arith.mulf %15, %16 : vector<8x2xf32>
    %18 = arith.addf %12, %17 : vector<8x2xf32>
    %cst = arith.constant 1.000000e+00 : f32
    %19 = vector.broadcast %cst : f32 to vector<8x2xf32>
    %20 = arith.maximumf %18, %19 : vector<8x2xf32>
    %cst_3 = arith.constant 1.000000e+00 : f32
    %21 = vector.broadcast %cst_3 : f32 to vector<8x2xf32>
    %22 = arith.minimumf %20, %21 : vector<8x2xf32>
    %c0_4 = arith.constant 0 : index
    %c0_5 = arith.constant 0 : index
    %23 = vector.load %arg3[%c0_4, %c0_5] : memref<8x2xf32, #tpu.memory_space<vmem>>, vector<8x2xf32>
    tpu.vector_store %arg3[%c0_4, %c0_5], %22 {strides = array<i32>} : memref<8x2xf32, #tpu.memory_space<vmem>>, vector<8x2xf32>,
    return
  }
  func.func @transform_0(%arg0: i32) -> (i32, i32) {
    %c0_i32 = arith.constant 0 : i32
    %c0_i32_0 = arith.constant 0 : i32
    return %arg0, %c0_i32 : i32, i32
  }
  func.func @transform_1(%arg0: i32) -> (i32, i32) {
    %c0_i32 = arith.constant 0 : i32
    %c0_i32_0 = arith.constant 0 : i32
    %c0_i32_1 = arith.constant 0 : i32
    return %c0_i32, %c0_i32_0 : i32, i32
  }
  func.func @transform_2(%arg0: i32) -> (i32, i32) {
    %c0_i32 = arith.constant 0 : i32
    %c0_i32_0 = arith.constant 0 : i32
    return %arg0, %c0_i32 : i32, i32
  }
}

</mosaic_0001>

<llo_original>
// kernel: _linear_clamp_impl.1
$region0: #{_linear_clamp_impl.1}
  #allocation0 [shape = 'u32[]', space=smem, size = 0x4, offset = 0x4, fixed_abs, tag = 'smem constant byte address 0x4 - core index']
  #allocation1 [shape = 'u32[144,128]{1,0:T(1,128)}', space=vmem, size = 0x12000, scoped, tag = 'internal scratch']
  %s0 = inlined_call_operand.vmem [shape: f32[4,3], index: 0, kind: input, shape index: {}]
  %s1 = inlined_call_operand.vmem [shape: f32[3,2], index: 1, kind: input, shape index: {}]
  %s2 = inlined_call_operand.vmem [shape: f32[4,2], index: 2, kind: output, shape index: {}]
  %s3 = sld [smem:[#allocation0]]
  $region48: #{_linear_clamp_impl.1} parent=0
    _
  %s5 = ssub.s32 1, %s3
  %s6 = scalar_select 0, %s5, %s3
  $region1: #{_linear_clamp_impl.1} parent=0
    #allocation2 [shape = 'u8[4096]{0}', space=vmem, size = 0x1000, scoped, tag = 'output window, operand 0, single buffered']
    // Predicated region
    $region2: #{_linear_clamp_impl.1} parent=1 // pred_check
      _
    $region3: #{_linear_clamp_impl.1} parent=1 // pred_check_branch
      %8 = sbr.rel (0) target = $region5
    $region4: #{_linear_clamp_impl.1} parent=1 // pred_region
      _
    $region5: #{_linear_clamp_impl.1} parent=1 // pred_fallthru
      _
    // Predicated region
    $region6: #{_linear_clamp_impl.1} parent=1 // pred_check
      _
    $region7: #{_linear_clamp_impl.1} parent=1 // pred_check_branch
      %10 = sbr.rel (0) target = $region9
    $region8: #{_linear_clamp_impl.1} parent=1 // pred_region
      _
    $region9: #{_linear_clamp_impl.1} parent=1 // pred_fallthru
      _
    %v11 = vld [vmem:[%s0] sm:$0xff]
    %v12 = vld [vmem:[%s1] sm:$0x7]
    %14 = vset.pattern.permute.xlu0 0
    %15 = vperm.xlu0 %14, %v11
    %v16 = vpop.permute.xlu0 %15
    %v18 = vlaneseq
    %v19 = vshrl.u32 %v18, 7
    %v20 = vsub.s32 0, %v19
    %v21 = vrot.slane %v12, %v20
    %v22 = vmul.f32 %v16, %v21
    %23 = vset.pattern.permute.xlu0 1
    %24 = vperm.xlu0 %23, %v11
    %v25 = vpop.permute.xlu0 %24
    %v27 = vlaneseq
    %v28 = vshrl.u32 %v27, 7
    %v29 = vsub.s32 1, %v28
    %v30 = vrot.slane %v12, %v29
    %v31 = vmul.f32 %v25, %v30
    %v32 = vadd.f32 %v22, %v31
    %33 = vset.pattern.permute.xlu0 2
    %34 = vperm.xlu0 %33, %v11
    %v35 = vpop.permute.xlu0 %34
    %v37 = vlaneseq
    %v38 = vshrl.u32 %v37, 7
    %v39 = vsub.s32 2, %v38
    %v40 = vrot.slane %v12, %v39
    %v41 = vmul.f32 %v35, %v40
    %v42 = vadd.f32 %v32, %v41
    %v43 = vmax.f32 %v42, 1.0
    %v44 = vmin.f32 %v43, 1.0
    %vm45 = vcmask 15360
    %46 = vst.msk [vmem:[#allocation2] sm:$0xff] %vm45, %v44
    // Predicated region
    $region10: #{_linear_clamp_impl.1} parent=1 // pred_check
      _
    $region11: #{_linear_clamp_impl.1} parent=1 // pred_check_branch
      %48 = sbr.rel (0) target = $region13
    $region12: #{_linear_clamp_impl.1} parent=1 // pred_region
      // Predicated region
      $region14: #{_linear_clamp_impl.1} parent=12 // pred_check
        _
      $region15: #{_linear_clamp_impl.1} parent=12 // pred_check_branch
        %50 = sbr.rel (0) target = $region17
      $region16: #{_linear_clamp_impl.1} parent=12 // pred_region
        // Predicated region
        $region18: #{_linear_clamp_impl.1} parent=16 // pred_check
          _
        $region19: #{_linear_clamp_impl.1} parent=16 // pred_check_branch
          %52 = sbr.rel target = $region21
        $region20: #{_linear_clamp_impl.1} parent=16 // pred_region
          // Predicated region
          $region33: #{_linear_clamp_impl.1} parent=20 // pred_check
            _
          $region34: #{_linear_clamp_impl.1} parent=20 // pred_check_branch
            %67 = sbr.rel (0) target = $region36
          $region35: #{_linear_clamp_impl.1} parent=20 // pred_region
            loop: start=0, step=1, limit=1
            $region37: #{_linear_clamp_impl.1} parent=35 // loop_pre_header
              _
            $region38: #{_linear_clamp_impl.1} parent=35 // loop_header
              %s70 = sphi 0, %s74
              %p71 = scmp.ge.s32.totalorder %s70, 1
              %s75 = sphi [#allocation2], [#allocation2]
              %s76 = sphi %s2, %s2
            $region39: #{_linear_clamp_impl.1} parent=35 // loop_header_branch
              %73 = sbr.rel (%p71) target = $region43
            $region40: #{_linear_clamp_impl.1} parent=35 // loop_body
              %v77 = vld [vmem:[%s75] sm:$0xf]
              %78 = vst [vmem:[%s76] sm:$0xf] %v77
            $region41: #{_linear_clamp_impl.1} parent=35 // loop_footer
              %s74 = sadd.s32 1, %s70
            $region42: #{_linear_clamp_impl.1} parent=35 // loop_footer_branch
              %69 = sbr.rel target = $region38
            $region43: #{_linear_clamp_impl.1} parent=35 // loop_exit
              _
          $region36: #{_linear_clamp_impl.1} parent=20 // pred_fallthru
            _
        $region21: #{_linear_clamp_impl.1} parent=16 // pred_fallthru
          _
        // Predicated region
        $region22: #{_linear_clamp_impl.1} parent=16 // pred_check
          _
        $region23: #{_linear_clamp_impl.1} parent=16 // pred_check_branch
          %54 = sbr.rel (0) target = $region25
        $region24: #{_linear_clamp_impl.1} parent=16 // pred_region
          loop: start=0, step=1, limit=1
          $region26: #{_linear_clamp_impl.1} parent=24 // loop_pre_header
            _
          $region27: #{_linear_clamp_impl.1} parent=24 // loop_header
            %s57 = sphi 0, %s61
            %p58 = scmp.ge.s32.totalorder %s57, 1
            %s62 = sphi [#allocation2], [#allocation2]
            %s63 = sphi %s2, %s2
          $region28: #{_linear_clamp_impl.1} parent=24 // loop_header_branch
            %60 = sbr.rel (%p58) target = $region32
          $region29: #{_linear_clamp_impl.1} parent=24 // loop_body
            %v64 = vld [vmem:[%s62] sm:$0xf]
            %65 = vst [vmem:[%s63] sm:$0xf] %v64
          $region30: #{_linear_clamp_impl.1} parent=24 // loop_footer
            %s61 = sadd.s32 1, %s57
          $region31: #{_linear_clamp_impl.1} parent=24 // loop_footer_branch
            %56 = sbr.rel target = $region27
          $region32: #{_linear_clamp_impl.1} parent=24 // loop_exit
            _
        $region25: #{_linear_clamp_impl.1} parent=16 // pred_fallthru
          _
      $region17: #{_linear_clamp_impl.1} parent=12 // pred_fallthru
        _
      %79 = vnop
    $region13: #{_linear_clamp_impl.1} parent=1 // pred_fallthru
      _
    // Predicated region
    $region44: #{_linear_clamp_impl.1} parent=1 // pred_check
      _
    $region45: #{_linear_clamp_impl.1} parent=1 // pred_check_branch
      %81 = sbr.rel (0) target = $region47
    $region46: #{_linear_clamp_impl.1} parent=1 // pred_region
      _
    $region47: #{_linear_clamp_impl.1} parent=1 // pred_fallthru
      _

</llo_original>
